<compile_context>
chip_gen: v7x
topology: tpu7x:2x2x1
jax: 0.10.0
libtpu: 0.0.40
codegen_flags: <defaults>
</compile_context>

<pallas_src>
import functools

import jax
import jax.numpy as jnp
from jax.experimental import pallas as pl
from jax.experimental.pallas import tpu as pltpu

LANES = 128
ACC_ROWS = 8                           # (8, 128) f32 accumulator = one vreg
TARGET_BLOCK_BYTES = 4 * 1024 * 1024   # ~4 MiB of input bytes per grid step
# 2 inputs x 2 buffers x 4 MiB = 16 MiB (+ 4 KiB acc + SMEM out). Explicitly
# above v5e's 16 MiB default scoped limit, well below physical VMEM on
# v5e/v6e (128 MiB) and v7x (64 MiB per TC).
VMEM_LIMIT_BYTES = 32 * 1024 * 1024


def _mse_kernel(x_ref, t_ref, partial_ref, acc_ref, *,
                rows, block_rows, steps_per_shard, need_mask, acc_rows):
    """Accumulate sum((x - t)^2) for one shard of the row range.

    Grid is (num_shards, steps_per_shard): the shard axis is 'parallel', the
    streaming axis is 'arbitrary' (serial reduction). The hot loop folds each
    block into a single-vreg (acc_rows, 128) accumulator; the cross-lane
    reduce + scalar SMEM store happen once in the epilogue.
    """
    s = pl.program_id(0)
    k = pl.program_id(1)

    @pl.when(k == 0)
    def _():
        acc_ref[...] = jnp.zeros_like(acc_ref)

    d = x_ref[...].astype(jnp.float32) - t_ref[...].astype(jnp.float32)
    sq = d * d

    def _accumulate(v):
        if acc_rows == block_rows:
            acc_ref[...] += v
        else:
            # Sublane-aligned reshape: same VPU add count as a full-block
            # accumulator, but the running sum stays in one vreg.
            acc_ref[...] += jnp.sum(v.reshape(-1, acc_rows, LANES), axis=0)

    if need_mask:
        # Global (unclamped) block index. Only the ragged tail block and the
        # clamped overhang slots pay for the iota + compare + select.
        gb = s * steps_per_shard + k
        is_ragged = (gb + 1) * block_rows > rows

        @pl.when(jnp.logical_not(is_ragged))
        def _():
            _accumulate(sq)

        @pl.when(is_ragged)
        def _():
            valid = rows - gb * block_rows        # <= 0 for overhang slots
            rid = jax.lax.broadcasted_iota(jnp.int32, sq.shape, 0)
            _accumulate(jnp.where(rid < valid, sq, 0.0))
    else:
        _accumulate(sq)

    @pl.when(k == pl.num_programs(1) - 1)
    def _():
        partial_ref[0, 0] = jnp.sum(acc_ref[...])


def _mse_sum_aligned(x2d, t2d):
    """Pallas sum((x2d - t2d)^2) over a lane-dense (rows, 128) slab."""
    rows = x2d.shape[0]
    itemsize = jnp.dtype(x2d.dtype).itemsize

    # Dtype-aware block rows: constant ~4 MiB of input bytes per step, rounded
    # to the sublane-packing multiple for this dtype (8 for f32, 16 for bf16).
    packing = 8 * max(1, 4 // itemsize)
    cap = max(packing,
              (TARGET_BLOCK_BYTES // (LANES * itemsize)) // packing * packing)

    num_blocks = pl.cdiv(rows, cap)
    if num_blocks == 1:
        # Fast path: whole slab is one full-extent block, single invocation.
        block_rows = rows
        num_shards = 1
        steps_per_shard = 1
        acc_rows = ACC_ROWS if rows % ACC_ROWS == 0 else rows
    else:
        block_rows = cap
        # Split the stream across 2 TensorCores (2x effective HBM bandwidth on
        # v7x; harmless / serial on single-TC v5e, v6e).
        num_shards = 2
        steps_per_shard = pl.cdiv(num_blocks, num_shards)
        acc_rows = ACC_ROWS

    need_mask = num_shards * steps_per_shard * block_rows != rows
    max_block = num_blocks - 1

    def in_index_map(s, k):
        # Clamp so the overhang grid slot (odd block counts) re-reads the last
        # block instead of going out of bounds; its contribution is masked to
        # zero inside the kernel.
        return (jnp.minimum(s * steps_per_shard + k, max_block), 0)

    kernel = functools.partial(
        _mse_kernel,
        rows=rows,
        block_rows=block_rows,
        steps_per_shard=steps_per_shard,
        need_mask=need_mask,
        acc_rows=acc_rows,
    )

    partials = pl.pallas_call(
        kernel,
        out_shape=jax.ShapeDtypeStruct((num_shards, 1), jnp.float32),
        grid_spec=pltpu.PrefetchScalarGridSpec(
            num_scalar_prefetch=0,
            grid=(num_shards, steps_per_shard),
            in_specs=[
                pl.BlockSpec((block_rows, LANES), in_index_map),
                pl.BlockSpec((block_rows, LANES), in_index_map),
            ],
            out_specs=pl.BlockSpec(
                (1, 1), lambda s, k: (s, 0), memory_space=pltpu.SMEM
            ),
            scratch_shapes=[pltpu.VMEM((acc_rows, LANES), jnp.float32)],
        ),
        compiler_params=pltpu.CompilerParams(
            # TODO(synk): on v7x, if profiling shows only one TC streaming,
            # switch the shard axis to pltpu.CORE_PARALLEL (plain "parallel"
            # was measured to barely change codegen).
            dimension_semantics=("parallel", "arbitrary"),
            vmem_limit_bytes=VMEM_LIMIT_BYTES,
        ),
        cost_estimate=pl.CostEstimate(
            flops=3 * rows * LANES,
            transcendentals=0,
            bytes_accessed=2 * rows * LANES * itemsize + num_shards * 4,
        ),
    )(x2d, t2d)

    return jnp.sum(partials)


def content_loss_pallas(x, target):
    """ContentLoss.forward: returns (input_unchanged, mse_loss vs. target)."""
    assert x.shape == target.shape, "input/target shape mismatch"
    n_elems = x.size

    xf = x.reshape(-1)
    tf = target.reshape(-1)

    rows = n_elems // LANES
    main = rows * LANES
    tail = n_elems - main

    total = jnp.float32(0.0)
    if rows > 0:
        # When n_elems is 128-aligned (the common case) these slices cover the
        # full arrays -> no copy; otherwise only the aligned prefix is sliced
        # (no full-array concatenate / zero padding).
        x2d = xf[:main].reshape(rows, LANES)
        t2d = tf[:main].reshape(rows, LANES)
        total = total + _mse_sum_aligned(x2d, t2d)
    if tail > 0:
        dt = xf[main:].astype(jnp.float32) - tf[main:].astype(jnp.float32)
        total = total + jnp.sum(dt * dt)

    loss = total / jnp.float32(n_elems)
    # TODO(synk): nn.Module statefulness (self.loss attribute) has no JAX
    # equivalent; the loss is returned alongside the pass-through input.
    return x, loss


if __name__ == "__main__":
    key = jax.random.PRNGKey(0)
    k1, k2, k3, k4, k5, k6 = jax.random.split(key, 6)

    # Small NCHW activation-like shape (the ContentLoss use case).
    shape = (2, 4, 16, 16)
    x = jax.random.normal(k1, shape, dtype=jnp.float32)
    target = jax.random.normal(k2, shape, dtype=jnp.float32)

    out, loss = content_loss_pallas(x, target)
    jax.block_until_ready((out, loss))

    ref_loss = jnp.mean((x - target) ** 2)
    assert jnp.allclose(loss, ref_loss, rtol=1e-5, atol=1e-6), (loss, ref_loss)
    assert jnp.array_equal(out, x)  # forward returns input unchanged

    # Non-128-multiple element count: exercises the wrapper-side tail sum and
    # the full-block (rows not a multiple of 8) accumulator path.
    shape_odd = (3, 5, 7, 11)
    xo = jax.random.normal(k3, shape_odd, dtype=jnp.float32)
    to = jax.random.normal(k4, shape_odd, dtype=jnp.float32)
    _, loss_o = content_loss_pallas(xo, to)
    jax.block_until_ready(loss_o)
    ref_o = jnp.mean((xo - to) ** 2)
    assert jnp.allclose(loss_o, ref_o, rtol=1e-5, atol=1e-6), (loss_o, ref_o)

    # Larger input: exercises the 2-shard streaming path with a ragged tail
    # block and a clamped (masked-out) overhang grid slot.
    shape_big = (33, 8, 128, 128)
    xb = jax.random.normal(k5, shape_big, dtype=jnp.float32)
    tb = jax.random.normal(k6, shape_big, dtype=jnp.float32)
    _, loss_b = content_loss_pallas(xb, tb)
    jax.block_until_ready(loss_b)
    ref_b = jnp.mean((xb - tb) ** 2)
    assert jnp.allclose(loss_b, ref_b, rtol=1e-4, atol=1e-6), (loss_b, ref_b)

    print("KERNEL_OK")
</pallas_src>

<mosaic_0001>
module attributes {stable_mosaic.version = 11 : i64} {
  func.func @_mse_kernel(%arg0: i32, %arg1: i32, %arg2: memref<16x128xf32, #tpu.memory_space<vmem>>, %arg3: memref<16x128xf32, #tpu.memory_space<vmem>>, %arg4: memref<1x1xf32, #tpu.memory_space<smem>>, %arg5: memref<8x128xf32, #tpu.memory_space<vmem>>) attributes {dimension_semantics = [#tpu.dimension_semantics<parallel>, #tpu.dimension_semantics<arbitrary>], iteration_bounds = array<i64: 1, 1>, scalar_prefetch = 0 : i64, scratch_operands = 1 : i64, tpu.core_type = #tpu.core_type<tc>, window_params = [{transform_indices = @transform_0, window_bounds = array<i64: 16, 128>}, {transform_indices = @transform_1, window_bounds = array<i64: 16, 128>}, {transform_indices = @transform_2, window_bounds = array<i64: 1, 1>}]} {
    %c0_i32 = arith.constant 0 : i32
    %0 = arith.cmpi eq, %arg1, %c0_i32 : i32
    %1 = arith.extui %0 : i1 to i32
    %c0_i32_0 = arith.constant 0 : i32
    %2 = arith.cmpi ne, %1, %c0_i32_0 : i32
    scf.if %2 {
      %cst_10 = arith.constant 0.000000e+00 : f32
      %15 = vector.broadcast %cst_10 : f32 to vector<8x128xf32>
      %c0_11 = arith.constant 0 : index
      %c0_12 = arith.constant 0 : index
      %16 = vector.load %arg5[%c0_11, %c0_12] : memref<8x128xf32, #tpu.memory_space<vmem>>, vector<8x128xf32>
      tpu.vector_store %arg5[%c0_11, %c0_12], %15 {strides = array<i32>} : memref<8x128xf32, #tpu.memory_space<vmem>>, vector<8x128xf32>,
    } else {
    }
    %c0 = arith.constant 0 : index
    %c0_1 = arith.constant 0 : index
    %3 = vector.load %arg2[%c0, %c0_1] : memref<16x128xf32, #tpu.memory_space<vmem>>, vector<16x128xf32>
    %c0_2 = arith.constant 0 : index
    %c0_3 = arith.constant 0 : index
    %4 = vector.load %arg3[%c0_2, %c0_3] : memref<16x128xf32, #tpu.memory_space<vmem>>, vector<16x128xf32>
    %5 = arith.subf %3, %4 : vector<16x128xf32>
    %6 = arith.mulf %5, %5 : vector<16x128xf32>
    %c0_4 = arith.constant 0 : index
    %c0_5 = arith.constant 0 : index
    %7 = vector.load %arg5[%c0_4, %c0_5] : memref<8x128xf32, #tpu.memory_space<vmem>>, vector<8x128xf32>
    %8 = vector.shape_cast %6 : vector<16x128xf32> to vector<2x8x128xf32>
    %cst = arith.constant dense<0.000000e+00> : vector<8x128xf32>
    %9 = vector.multi_reduction <add>, %8, %cst [0] : vector<2x8x128xf32> to vector<8x128xf32>
    %10 = arith.addf %7, %9 : vector<8x128xf32>
    %c0_6 = arith.constant 0 : index
    %c0_7 = arith.constant 0 : index
    %11 = vector.load %arg5[%c0_6, %c0_7] : memref<8x128xf32, #tpu.memory_space<vmem>>, vector<8x128xf32>
    tpu.vector_store %arg5[%c0_6, %c0_7], %10 {strides = array<i32>} : memref<8x128xf32, #tpu.memory_space<vmem>>, vector<8x128xf32>,
    %c0_i32_8 = arith.constant 0 : i32
    %12 = arith.cmpi eq, %arg1, %c0_i32_8 : i32
    %13 = arith.extui %12 : i1 to i32
    %c0_i32_9 = arith.constant 0 : i32
    %14 = arith.cmpi ne, %13, %c0_i32_9 : i32
    scf.if %14 {
      %c0_10 = arith.constant 0 : index
      %c0_11 = arith.constant 0 : index
      %15 = vector.load %arg5[%c0_10, %c0_11] : memref<8x128xf32, #tpu.memory_space<vmem>>, vector<8x128xf32>
      %16 = vector.shape_cast %15 : vector<8x128xf32> to vector<1x8x128xf32>
      %cst_12 = arith.constant dense<0.000000e+00> : vector<1xf32>
      %17 = vector.multi_reduction <add>, %16, %cst_12 [1, 2] : vector<1x8x128xf32> to vector<1xf32>
      %18 = vector.shape_cast %17 : vector<1xf32> to vector<1x1x1xf32>
      %19 = vector.extract %18[0, 0, 0] : f32 from vector<1x1x1xf32>
      %c0_13 = arith.constant 0 : index
      %c0_14 = arith.constant 0 : index
      %20 = memref.load %arg4[%c0_13, %c0_14] : memref<1x1xf32, #tpu.memory_space<smem>>
      memref.store %19, %arg4[%c0_13, %c0_14] : memref<1x1xf32, #tpu.memory_space<smem>>
    } else {
    }
    return
  }
  func.func @transform_0(%arg0: i32, %arg1: i32) -> (i32, i32) {
    %c1_i32 = arith.constant 1 : i32
    %0 = arith.muli %arg0, %c1_i32 : i32
    %1 = arith.addi %0, %arg1 : i32
    %c0_i32 = arith.constant 0 : i32
    %2 = arith.minsi %1, %c0_i32 : i32
    %c0_i32_0 = arith.constant 0 : i32
    %c0_i32_1 = arith.constant 0 : i32
    return %2, %c0_i32_0 : i32, i32
  }
  func.func @transform_1(%arg0: i32, %arg1: i32) -> (i32, i32) {
    %c1_i32 = arith.constant 1 : i32
    %0 = arith.muli %arg0, %c1_i32 : i32
    %1 = arith.addi %0, %arg1 : i32
    %c0_i32 = arith.constant 0 : i32
    %2 = arith.minsi %1, %c0_i32 : i32
    %c0_i32_0 = arith.constant 0 : i32
    %c0_i32_1 = arith.constant 0 : i32
    return %2, %c0_i32_0 : i32, i32
  }
  func.func @transform_2(%arg0: i32, %arg1: i32) -> (i32, i32) {
    %c0_i32 = arith.constant 0 : i32
    %c0_i32_0 = arith.constant 0 : i32
    return %arg0, %c0_i32 : i32, i32
  }
}

</mosaic_0001>

<llo_original>
// kernel: tpu_custom_call.1
$region0: #{tpu_custom_call.1}
  #allocation0 [shape = 'u32[]', space=smem, size = 0x4, offset = 0x4, fixed_abs, tag = 'smem constant byte address 0x4 - core index']
  #allocation1 [shape = 'u32[144,128]{1,0:T(1,128)}', space=vmem, size = 0x12000, scoped, tag = 'internal scratch']
  #allocation2 [shape = 'f32[8,128]{1,0:T(8,128)}', space=vmem, size = 0x1000, scoped, tag = 'scratch operand']
  %s0 = inlined_call_operand.hbm [shape: f32[16,128], index: 0, kind: input, shape index: {}]
  %s1 = inlined_call_operand.hbm [shape: f32[16,128], index: 1, kind: input, shape index: {}]
  %s2 = inlined_call_operand.hbm [shape: f32[1,1], index: 2, kind: output, shape index: {}]
  %s3 = sld [smem:[#allocation0]]
  $region34: #{tpu_custom_call.1} parent=0
    _
  %s5 = ssub.s32 1, %s3
  %s6 = scalar_select 0, %s5, %s3
  $region1: #{tpu_custom_call.1} parent=0
    #allocation3 [shape = 'u8[8192]{0}', space=vmem, size = 0x2000, scoped, tag = 'input window, operand 0, single buffered']
    #allocation4 [shape = 's32[1]{0}', space=sflag, size = 0x4, scoped, tag = 'scoped memory for tpu_custom_call.1']
    #allocation5 [shape = 's32[1]{0}', space=sflag, size = 0x4, scoped, tag = 'scoped memory for tpu_custom_call.1']
    #allocation6 [shape = 'u8[8192]{0}', space=vmem, size = 0x2000, scoped, tag = 'input window, operand 1, single buffered']
    #allocation7 [shape = 's32[1]{0}', space=sflag, size = 0x4, scoped, tag = 'scoped memory for tpu_custom_call.1']
    #allocation8 [shape = 'u8[512]{0}', space=smem, size = 0x200, scoped, tag = 'output window, operand 0, single buffered']
    %7 = vsyncpa [#allocation4], 0
    %8 = vsyncpa [#allocation7], 0
    %9 = vsyncpa [#allocation5], 0
    // Predicated region
    $region2: #{tpu_custom_call.1} parent=1 // pred_check
      _
    $region3: #{tpu_custom_call.1} parent=1 // pred_check_branch
      %11 = sbr.rel (0) target = $region5
    $region4: #{tpu_custom_call.1} parent=1 // pred_region
      %s12 = sadd.s32 0, 0
      %p13 = scmp.lt.s32.totalorder %s12, 0
      %s14 = scalar_select %p13, %s12, 0
      %s15 = smul.u32 2, %s14
      %s17 = ssub.s32 256, 256
      %18 = vsyncadd [#allocation4], %s17
      %s19 = smul.addr %s15, 128
      %s20 = scalar_lea.hbm %s0, %s19
      %s21 = sshll.u32 [#allocation3], 4
      %s22 = int_to_ptr.vmem [resolvable:$true] %s21
      %27 = dma.hbm_to_vmem [thread:$0]  %s20, 256, %s22, [#allocation4], 128, 128, 8
    $region5: #{tpu_custom_call.1} parent=1 // pred_fallthru
      _
    // Predicated region
    $region6: #{tpu_custom_call.1} parent=1 // pred_check
      _
    $region7: #{tpu_custom_call.1} parent=1 // pred_check_branch
      %29 = sbr.rel (0) target = $region9
    $region8: #{tpu_custom_call.1} parent=1 // pred_region
      %s30 = sadd.s32 0, 0
      %p31 = scmp.lt.s32.totalorder %s30, 0
      %s32 = scalar_select %p31, %s30, 0
      %s33 = smul.u32 2, %s32
      %s35 = ssub.s32 256, 256
      %36 = vsyncadd [#allocation7], %s35
      %s37 = smul.addr %s33, 128
      %s38 = scalar_lea.hbm %s1, %s37
      %s39 = sshll.u32 [#allocation6], 4
      %s40 = int_to_ptr.vmem [resolvable:$true] %s39
      %45 = dma.hbm_to_vmem [thread:$0]  %s38, 256, %s40, [#allocation7], 128, 128, 8
    $region9: #{tpu_custom_call.1} parent=1 // pred_fallthru
      _
    // Predicated region
    $region10: #{tpu_custom_call.1} parent=1 // pred_check
      _
    $region11: #{tpu_custom_call.1} parent=1 // pred_check_branch
      %47 = sbr.rel (0) target = $region13
    $region12: #{tpu_custom_call.1} parent=1 // pred_region
      %48 = dma.done [#allocation4], 256
    $region13: #{tpu_custom_call.1} parent=1 // pred_fallthru
      _
    // Predicated region
    $region14: #{tpu_custom_call.1} parent=1 // pred_check
      _
    $region15: #{tpu_custom_call.1} parent=1 // pred_check_branch
      %50 = sbr.rel (0) target = $region17
    $region16: #{tpu_custom_call.1} parent=1 // pred_region
      %51 = dma.done [#allocation7], 256
    $region17: #{tpu_custom_call.1} parent=1 // pred_fallthru
      _
    %s52 = sadd.s32 0, 0
    %p53 = scmp.lt.s32.totalorder %s52, 0
    %s54 = scalar_select %p53, %s52, 0
    %s55 = smul.u32 2, %s54
    %s56 = sadd.s32 0, 0
    %p57 = scmp.lt.s32.totalorder %s56, 0
    %s58 = scalar_select %p57, %s56, 0
    %s59 = smul.u32 2, %s58
    %p60 = scmp.eq.s32.totalorder 0, 0
    // Predicated region
    $region18: #{tpu_custom_call.1} parent=1 // pred_check
      %p61 = pneg %p60
    $region19: #{tpu_custom_call.1} parent=1 // pred_check_branch
      %63 = sbr.rel (%p61) target = $region21
    $region20: #{tpu_custom_call.1} parent=1 // pred_region
      %64 = vst [vmem:[#allocation2] sm:$0xff] 0.0
    $region21: #{tpu_custom_call.1} parent=1 // pred_fallthru
      _
    %v65 = vld [vmem:[#allocation3] sm:$0xff]
    %v66 = vld [vmem:[#allocation3 + $0x8] sm:$0xff]
    %v67 = vld [vmem:[#allocation6] sm:$0xff]
    %v68 = vld [vmem:[#allocation6 + $0x8] sm:$0xff]
    %v69 = vsub.f32 %v65, %v67
    %v70 = vsub.f32 %v66, %v68
    %v71 = vmul.f32 %v69, %v69
    %v72 = vmul.f32 %v70, %v70
    %v73 = vld [vmem:[#allocation2] sm:$0xff]
    %v74 = vadd.f32 %v71, %v72
    %v75 = vadd.f32 %v73, %v74
    %76 = vst [vmem:[#allocation2] sm:$0xff] %v75
    // Predicated region
    $region22: #{tpu_custom_call.1} parent=1 // pred_check
      %p77 = pneg %p60
    $region23: #{tpu_custom_call.1} parent=1 // pred_check_branch
      %79 = sbr.rel (%p77) target = $region25
    $region24: #{tpu_custom_call.1} parent=1 // pred_region
      %v80 = vld [vmem:[#allocation2] sm:$0xff]
      %81 = vadd.xlane.f32.xlu0 %v80
      %v82 = vpop.xlane.xlu0 %81
      %v83 = vrot.slane %v82, 4
      %v84 = vadd.f32 %v82, %v83
      %v85 = vrot.slane %v84, 2
      %v86 = vadd.f32 %v84, %v85
      %v87 = vrot.slane %v86, 1
      %v88 = vadd.f32 %v86, %v87
      %s89 = vtos %v88
      %s90 = scalar_lea.smem [#allocation8], 0
      %91 = sst [smem:[%s90]] %s89
    $region25: #{tpu_custom_call.1} parent=1 // pred_fallthru
      _
    // Predicated region
    $region26: #{tpu_custom_call.1} parent=1 // pred_check
      _
    $region27: #{tpu_custom_call.1} parent=1 // pred_check_branch
      %93 = sbr.rel (0) target = $region29
    $region28: #{tpu_custom_call.1} parent=1 // pred_region
      %s95 = ssub.s32 16, 16
      %96 = vsyncadd [#allocation5], %s95
      %99 = dma.smem_to_hbm [#allocation8], 16, %s2, [#allocation5]
    $region29: #{tpu_custom_call.1} parent=1 // pred_fallthru
      _
    // Predicated region
    $region30: #{tpu_custom_call.1} parent=1 // pred_check
      _
    $region31: #{tpu_custom_call.1} parent=1 // pred_check_branch
      %101 = sbr.rel (0) target = $region33
    $region32: #{tpu_custom_call.1} parent=1 // pred_region
      %102 = dma.done [#allocation5], 16
    $region33: #{tpu_custom_call.1} parent=1 // pred_fallthru
      _
    %103 = sfence
    %104 = vsyncpa [#allocation4], 1
    %105 = vsyncpa [#allocation7], 1
    %106 = vsyncpa [#allocation5], 1

</llo_original>
